<compile_context>
chip_gen: v7x
topology: tpu7x:2x2x1
jax: 0.10.0
libtpu: 0.0.40
codegen_flags: <defaults>
</compile_context>

<pallas_src>
import jax
import jax.numpy as jnp
from jax.experimental import pallas as pl
from jax.experimental.pallas import tpu as pltpu


def _make_linear_stack_kernel(in_f: int):
    """Kernel factory: in_f is static so the FMA chain fully unrolls (VPU only)."""

    def kernel(x_ref, wp_ref, o_ref):
        # x_ref : SMEM (in_f,)          -- input scalars
        # wp_ref: VMEM (in_f + 1, OUT)  -- rows 0..in_f-1 = W^T, row in_f = bias
        # o_ref : VMEM (2, OUT)         -- both rows equal y
        y = wp_ref[in_f:in_f + 1, :]                 # bias row, shape (1, OUT)
        for k in range(in_f):                        # static unroll: pure VPU fmul/fadd
            y = y + x_ref[k] * wp_ref[k:k + 1, :]
        # torch.stack((y, y), dim=1).squeeze(0) for batch==1 -> (2, OUT), rows identical
        o_ref[...] = jnp.broadcast_to(y, o_ref.shape).astype(o_ref.dtype)

    return kernel


def model_forward(x, weight, bias):
    batch, in_f = x.shape
    out_f = weight.shape[0]
    assert batch == 1, "reference module squeezes dim 0, so batch must be 1"

    # Pack W^T and bias into one operand -> single VMEM DMA instead of two.
    wp = jnp.concatenate([weight.T, bias.reshape(1, out_f)], axis=0)  # (in_f+1, out_f)
    x_s = x.reshape(in_f)                                             # 1-D for SMEM

    return pl.pallas_call(
        _make_linear_stack_kernel(in_f),
        out_shape=jax.ShapeDtypeStruct((2, out_f), jnp.float32),
        in_specs=[
            pl.BlockSpec(memory_space=pltpu.MemorySpace.SMEM),   # x scalars
            pl.BlockSpec(memory_space=pltpu.MemorySpace.VMEM),   # packed W^T|b
        ],
        out_specs=pl.BlockSpec(memory_space=pltpu.MemorySpace.VMEM),
    )(x_s, wp)


if __name__ == "__main__":
    key = jax.random.PRNGKey(0)
    kx, kw, kb = jax.random.split(key, 3)

    # nn.Linear(2, 2): weight (2, 2), bias (2,)
    weight = jax.random.normal(kw, (2, 2), dtype=jnp.float32) * 0.5
    bias = jax.random.normal(kb, (2,), dtype=jnp.float32) * 0.1

    # Input consistent with the module: x = torch.randn(1, 2)
    x = jax.random.normal(kx, (1, 2), dtype=jnp.float32)

    out = model_forward(x, weight, bias)
    out = jax.block_until_ready(out)

    # Reference (plain JAX): y = x @ W^T + b; stack((y, y), dim=1).squeeze(0)
    y_ref = x @ weight.T + bias[None, :]
    ref = jnp.squeeze(jnp.stack((y_ref, y_ref), axis=1), axis=0)

    assert out.shape == (2, 2)
    assert jnp.allclose(out, ref, atol=1e-5), (out, ref)

    print("KERNEL_OK")
</pallas_src>

<mosaic_0001>
module attributes {stable_mosaic.version = 11 : i64} {
  func.func @kernel(%arg0: memref<2xf32, #tpu.memory_space<smem>>, %arg1: memref<3x2xf32, #tpu.memory_space<vmem>>, %arg2: memref<2x2xf32, #tpu.memory_space<vmem>>) attributes {dimension_semantics = [], scalar_prefetch = 0 : i64, scratch_operands = 0 : i64, tpu.core_type = #tpu.core_type<tc>} {
    %c2 = arith.constant 2 : index
    %c0 = arith.constant 0 : index
    %0 = vector.load %arg1[%c2, %c0] : memref<3x2xf32, #tpu.memory_space<vmem>>, vector<1x2xf32>
    %c0_0 = arith.constant 0 : index
    %1 = memref.load %arg0[%c0_0] : memref<2xf32, #tpu.memory_space<smem>>
    %c0_1 = arith.constant 0 : index
    %c0_2 = arith.constant 0 : index
    %2 = vector.load %arg1[%c0_1, %c0_2] : memref<3x2xf32, #tpu.memory_space<vmem>>, vector<1x2xf32>
    %3 = vector.broadcast %1 : f32 to vector<1x2xf32>
    %4 = arith.mulf %3, %2 : vector<1x2xf32>
    %5 = arith.addf %0, %4 : vector<1x2xf32>
    %c1 = arith.constant 1 : index
    %6 = memref.load %arg0[%c1] : memref<2xf32, #tpu.memory_space<smem>>
    %c1_3 = arith.constant 1 : index
    %c0_4 = arith.constant 0 : index
    %7 = vector.load %arg1[%c1_3, %c0_4] : memref<3x2xf32, #tpu.memory_space<vmem>>, vector<1x2xf32>
    %8 = vector.broadcast %6 : f32 to vector<1x2xf32>
    %9 = arith.mulf %8, %7 : vector<1x2xf32>
    %10 = arith.addf %5, %9 : vector<1x2xf32>
    %11 = vector.shape_cast %10 : vector<1x2xf32> to vector<1x2xf32>
    %12 = vector.broadcast %11 : vector<1x2xf32> to vector<2x2xf32>
    %c0_5 = arith.constant 0 : index
    %c0_6 = arith.constant 0 : index
    %13 = vector.load %arg2[%c0_5, %c0_6] : memref<2x2xf32, #tpu.memory_space<vmem>>, vector<2x2xf32>
    tpu.vector_store %arg2[%c0_5, %c0_6], %12 {strides = array<i32>} : memref<2x2xf32, #tpu.memory_space<vmem>>, vector<2x2xf32>,
    return
  }
}

</mosaic_0001>

<llo_original>
// kernel: tpu_custom_call.1
$region0: #{tpu_custom_call.1}
  #allocation0 [shape = 'u32[]', space=smem, size = 0x4, offset = 0x4, fixed_abs, tag = 'smem constant byte address 0x4 - core index']
  #allocation1 [shape = 'u32[144,128]{1,0:T(1,128)}', space=vmem, size = 0x12000, scoped, tag = 'internal scratch']
  %s0 = inlined_call_operand.vmem [shape: f32[2], index: 0, kind: input, shape index: {}]
  %s1 = inlined_call_operand.vmem [shape: f32[3,2], index: 1, kind: input, shape index: {}]
  %s2 = inlined_call_operand.hbm [shape: f32[2,2], index: 2, kind: output, shape index: {}]
  %s3 = sld [smem:[#allocation0]]
  $region22: #{tpu_custom_call.1} parent=0
    _
  %s5 = ssub.s32 1, %s3
  %s6 = scalar_select 0, %s5, %s3
  $region1: #{tpu_custom_call.1} parent=0
    #allocation2 [shape = 'u8[512]{0}', space=smem, size = 0x200, scoped, tag = 'input window, operand 0, single buffered']
    #allocation3 [shape = 's32[1]{0}', space=sflag, size = 0x4, scoped, tag = 'scoped memory for tpu_custom_call.1']
    #allocation4 [shape = 's32[1]{0}', space=sflag, size = 0x4, scoped, tag = 'scoped memory for tpu_custom_call.1']
    #allocation5 [shape = 'u8[1024]{0}', space=vmem, size = 0x400, scoped, tag = 'output window, operand 0, single buffered']
    %7 = vsyncpa [#allocation4], 0
    %8 = vsyncpa [#allocation3], 0
    // Predicated region
    $region2: #{tpu_custom_call.1} parent=1 // pred_check
      _
    $region3: #{tpu_custom_call.1} parent=1 // pred_check_branch
      %10 = sbr.rel (0) target = $region5
    $region4: #{tpu_custom_call.1} parent=1 // pred_region
      %s12 = ssub.s32 16, 16
      %13 = vsyncadd [#allocation4], %s12
      %s15 = sshll.u32 %s0, 4
      %s16 = int_to_ptr.vmem [resolvable:$true] %s15
      %18 = dma.vmem_to_smem %s16, 16, [#allocation2], [#allocation4]
    $region5: #{tpu_custom_call.1} parent=1 // pred_fallthru
      _
    // Predicated region
    $region6: #{tpu_custom_call.1} parent=1 // pred_check
      _
    $region7: #{tpu_custom_call.1} parent=1 // pred_check_branch
      %20 = sbr.rel (0) target = $region9
    $region8: #{tpu_custom_call.1} parent=1 // pred_region
      _
    $region9: #{tpu_custom_call.1} parent=1 // pred_fallthru
      _
    // Predicated region
    $region10: #{tpu_custom_call.1} parent=1 // pred_check
      _
    $region11: #{tpu_custom_call.1} parent=1 // pred_check_branch
      %22 = sbr.rel (0) target = $region13
    $region12: #{tpu_custom_call.1} parent=1 // pred_region
      %23 = dma.done [#allocation4], 16
    $region13: #{tpu_custom_call.1} parent=1 // pred_fallthru
      _
    %24 = sfence
    %v25 = vld [vmem:[%s1 + $0x2] sm:$0x1]
    %s26 = sld [smem:[#allocation2]]
    %v27 = vld [vmem:[%s1] sm:$0x1]
    %v28 = vstv %s26
    %v29 = vmul.f32 %v28, %v27
    %v30 = vadd.f32 %v25, %v29
    %s31 = sld [smem:[#allocation2 + $0x1]]
    %v32 = vld [vmem:[%s1 + $0x1] sm:$0x1]
    %v33 = vstv %s31
    %v34 = vmul.f32 %v33, %v32
    %v35 = vadd.f32 %v30, %v34
    %v36 = vlaneseq
    %v37 = vshrl.u32 %v36, 7
    %v38 = vsub.s32 0, %v37
    %v39 = vrot.slane %v35, %v38
    %vm40 = vcmask 9216
    %41 = vst.msk [vmem:[#allocation5] sm:$0x3] %vm40, %v39
    // Predicated region
    $region14: #{tpu_custom_call.1} parent=1 // pred_check
      _
    $region15: #{tpu_custom_call.1} parent=1 // pred_check_branch
      %43 = sbr.rel (0) target = $region17
    $region16: #{tpu_custom_call.1} parent=1 // pred_region
      %s45 = ssub.s32 32, 32
      %46 = vsyncadd [#allocation3], %s45
      %s48 = sshll.u32 [#allocation5], 4
      %s49 = int_to_ptr.vmem [resolvable:$true] %s48
      %51 = dma.vmem_to_hbm [thread:$0]  %s49, 32, %s2, [#allocation3]
    $region17: #{tpu_custom_call.1} parent=1 // pred_fallthru
      _
    // Predicated region
    $region18: #{tpu_custom_call.1} parent=1 // pred_check
      _
    $region19: #{tpu_custom_call.1} parent=1 // pred_check_branch
      %53 = sbr.rel (0) target = $region21
    $region20: #{tpu_custom_call.1} parent=1 // pred_region
      %54 = dma.done [#allocation3], 32
    $region21: #{tpu_custom_call.1} parent=1 // pred_fallthru
      _
    %55 = vsyncpa [#allocation3], 1
    %56 = vsyncpa [#allocation4], 1

</llo_original>
